<compile_context>
chip_gen: v5e
topology: v5e:2x2
jax: 0.10.0
libtpu: 0.0.40
codegen_flags: <defaults>
</compile_context>

<pallas_src>
import functools

import numpy as np
import jax
import jax.numpy as jnp
from jax.experimental import pallas as pl
from jax.experimental.pallas import tpu as pltpu

_LANE = 128
_INV_SQRT2 = 0.7071067811865476


def _std_normal_cdf(x):
    """Phi(x) = 0.5*(1 + erf(x/sqrt(2))) via Abramowitz-Stegun 7.1.26.

    |error| < 1.5e-7; uses only VPU mul/add/div/abs/select + one EUP exp,
    so it stays off the saturated vector-ALU path the compare loop used.
    """
    z = x * _INV_SQRT2
    a = jnp.abs(z)
    t = 1.0 / (1.0 + 0.3275911 * a)
    poly = t * (0.254829592 + t * (-0.284496736 + t * (1.421413741
               + t * (-1.453152027 + t * 1.061405429))))
    erf_abs = 1.0 - poly * jnp.exp(-a * a)
    erf_z = jnp.where(z < 0.0, -erf_abs, erf_abs)
    return 0.5 * (1.0 + erf_z)


def _make_kernel(n_tokens, exact):
    def kernel(x_ref, paa_mat_ref, bp_ref, out_ref):
        # x_ref:       (TB, L)      native dtype VMEM (one batch tile)
        # paa_mat_ref: (L, NW_pad)  f32 VMEM (window-averaging matrix)
        # bp_ref:      (NBP,)       f32 SMEM (breakpoints; exact path only)
        # out_ref:     (TB, NW_pad) i8 VMEM (lane-dense token tile)
        x = x_ref[...].astype(jnp.float32)     # cast per tile, not in wrapper
        L = x.shape[1]

        # Fused moments in one pass over the (TB, L) tile.
        s1 = jnp.sum(x, axis=1, keepdims=True)
        s2 = jnp.sum(x * x, axis=1, keepdims=True)
        mean = s1 * (1.0 / L)
        var = (s2 - s1 * mean) * (1.0 / (L - 1))   # unbiased, matches torch.std
        var = jnp.maximum(var, 0.0)
        inv = 1.0 / (jnp.sqrt(var) + 1e-8)

        # PAA on the raw signal via the MXU; normalize the small (TB, NW_pad)
        # result (exact: every real column of the averaging matrix sums to 1).
        paa_raw = jnp.dot(x, paa_mat_ref[...], preferred_element_type=jnp.float32)
        paa = (paa_raw - mean) * inv

        if exact:
            # Bit-exact torch.bucketize(right=False): #{breakpoints < value}.
            nbp = bp_ref.shape[0]
            tok = jnp.zeros(paa.shape, dtype=jnp.int32)
            for j in range(nbp):               # static, small (n_tokens - 1)
                tok = tok + (paa > bp_ref[j]).astype(jnp.int32)
        else:
            # Closed-form equiprobable-bucket map (boundary-only deviation).
            u = _std_normal_cdf(paa)
            tok = jnp.clip(jnp.floor(u * n_tokens), 0.0,
                           n_tokens - 1.0).astype(jnp.int32)

        out_ref[...] = tok.astype(out_ref.dtype)

    return kernel


@functools.lru_cache(maxsize=None)
def _sax_constants(L, window_size, n_tokens):
    """Cached per-shape host constants: averaging matrix + breakpoints."""
    nw = L // window_size
    nw_pad = max(_LANE, ((nw + _LANE - 1) // _LANE) * _LANE)

    # PAA averaging matrix (L, nw_pad): sample i -> window i // window_size
    # with weight 1/window_size; remainder samples and padding columns are 0.
    paa_mat = np.zeros((L, nw_pad), dtype=np.float32)
    idx = np.arange(nw * window_size)
    paa_mat[idx, idx // window_size] = np.float32(1.0 / window_size)

    # Gaussian equiprobable breakpoints: ndtri(linspace(0,1,n+1)[1:-1]).
    probs = np.linspace(0.0, 1.0, n_tokens + 1)[1:-1].astype(np.float32)
    breakpoints = jax.scipy.special.ndtri(jnp.asarray(probs)).astype(jnp.float32)

    return jnp.asarray(paa_mat), breakpoints, nw, nw_pad


def _vmem_budget():
    """(per-x-buffer target bytes, scoped vmem_limit_bytes) per generation."""
    try:
        cap = int(pltpu.get_tpu_info().vmem_capacity_bytes)
    except Exception:
        cap = 64 << 20                      # conservative: v7x per-core VMEM
    if cap >= (100 << 20):                  # v5e / v6e: 128 MiB physical
        return 8 << 20, 64 << 20
    return 4 << 20, 48 << 20                # v7x: 64 MiB physical per core


def _pick_tile_b(B, L, x_itemsize, nw_pad, paa_bytes):
    x_buf_target, vmem_limit = _vmem_budget()

    tb = x_buf_target // max(x_itemsize * L, 1)
    tb = max(32, min(4096, (tb // 32) * 32))    # multiple of 32 (int8 output)

    # Keep >= 2 grid steps when the batch allows it so the second TensorCore
    # (v7x) has work under dimension_semantics=("parallel",).
    if B >= 64:
        max_useful = max(32, ((B // 2) // 32) * 32)
    else:
        max_useful = 32
    tb = min(tb, max_useful)

    def fits(t):
        work = (2 * t * L * x_itemsize          # double-buffered x tiles
                + t * L * 4                     # in-kernel f32 cast temporary
                + 2 * paa_bytes                 # PAA matrix (worst case 2 bufs)
                + 2 * t * nw_pad                # double-buffered int8 out tiles
                + t * nw_pad * 4)               # f32 PAA / token temporaries
        return work <= int(0.75 * vmem_limit)

    while tb > 32 and not fits(tb):
        tb -= 32
    return tb, vmem_limit


def sax_tokenize(x, n_tokens=32, window_size=125 // 10, exact_bucketize=False,
                 out_dtype=jnp.int32):
    """x: (B, 1, L) float -> tokens: (B, L // window_size) out_dtype."""
    B, C, L = x.shape
    assert C == 1, "SAX_Tokenizer expects a single input channel"
    assert L >= 2, "unbiased std needs at least 2 samples"
    assert n_tokens <= 128, "int8 in-kernel token storage needs n_tokens <= 128"

    paa_mat, breakpoints, nw, nw_pad = _sax_constants(int(L), int(window_size),
                                                      int(n_tokens))
    assert nw >= 1
    paa_bytes = int(paa_mat.size) * 4

    x2 = x.reshape(B, L)
    if x2.dtype not in (jnp.float32, jnp.bfloat16, jnp.float16):
        x2 = x2.astype(jnp.float32)
    itemsize = int(x2.dtype.itemsize)

    tb, vmem_limit = _pick_tile_b(int(B), int(L), itemsize, nw_pad, paa_bytes)
    b_pad = pl.cdiv(B, tb) * tb
    if b_pad != B:
        # Zero rows are harmless (all ops are row-wise) and sliced off below.
        x2 = jnp.pad(x2, ((0, b_pad - B), (0, 0)))

    kernel = _make_kernel(int(n_tokens), bool(exact_bucketize))

    def build(single_buffer_const):
        paa_kwargs = {}
        if single_buffer_const:
            # Constant index_map -> no need to double-buffer the matrix.
            paa_kwargs["pipeline_mode"] = pl.Buffered(1)
        return pl.pallas_call(
            kernel,
            out_shape=jax.ShapeDtypeStruct((b_pad, nw_pad), jnp.int8),
            grid=(b_pad // tb,),
            in_specs=[
                pl.BlockSpec((tb, L), lambda i: (i, 0)),            # x tile
                pl.BlockSpec((L, nw_pad), lambda i: (0, 0),          # PAA mat
                             **paa_kwargs),
                pl.BlockSpec(memory_space=pltpu.SMEM),                # breakpts
            ],
            out_specs=pl.BlockSpec((tb, nw_pad), lambda i: (i, 0)),
            compiler_params=pltpu.CompilerParams(
                dimension_semantics=("parallel",),
                vmem_limit_bytes=vmem_limit),
            cost_estimate=pl.CostEstimate(
                flops=2 * b_pad * L * nw_pad,
                transcendentals=0 if exact_bucketize else b_pad * nw_pad,
                bytes_accessed=(b_pad * L * itemsize + paa_bytes
                                + b_pad * nw_pad)),
        )

    try:
        out = build(True)(x2, paa_mat, breakpoints)
    except Exception:
        # Older jax builds may not accept pipeline_mode on a top-level
        # pallas_call BlockSpec; fall back to the default double-buffering.
        out = build(False)(x2, paa_mat, breakpoints)

    return out[:B, :nw].astype(out_dtype)


def _reference(x, n_tokens, window_size):
    # Pure-JAX reference matching the PyTorch forward (torch.bucketize path).
    B, C, L = x.shape
    xn = (x - x.mean(axis=2, keepdims=True)) / (
        x.std(axis=2, ddof=1, keepdims=True) + 1e-8)
    xn = xn[:, 0, :]
    nw = L // window_size
    paa = xn[:, : nw * window_size].reshape(B, nw, window_size).mean(axis=2)
    probs = np.linspace(0.0, 1.0, n_tokens + 1)[1:-1].astype(np.float32)
    bp = jax.scipy.special.ndtri(jnp.asarray(probs)).astype(jnp.float32)
    return jnp.sum(paa[:, :, None] > bp[None, None, :], axis=-1).astype(jnp.int32)


if __name__ == "__main__":
    n_tokens = 32
    window_size = 125 // 10  # 12

    # Case 1: small, exact multiple of the window (also exercises B padding).
    B, L = 2, 48
    x = jax.random.normal(jax.random.PRNGKey(0), (B, 1, L), dtype=jnp.float32)
    ref = jax.block_until_ready(_reference(x, n_tokens, window_size))

    # Fast (default) path: closed-form CDF tokenization; may differ from
    # torch.bucketize by at most one token exactly at breakpoint boundaries.
    tok_fast = jax.block_until_ready(sax_tokenize(x, n_tokens, window_size))
    assert tok_fast.shape == (B, L // window_size)
    assert tok_fast.dtype == jnp.int32
    assert int(jnp.max(jnp.abs(tok_fast - ref))) <= 1

    # Exact path: bit-identical to the bucketize reference.
    tok_exact = jax.block_until_ready(
        sax_tokenize(x, n_tokens, window_size, exact_bucketize=True))
    np.testing.assert_array_equal(np.asarray(tok_exact), np.asarray(ref))

    # Case 2: ragged batch + ragged L (remainder samples dropped).
    B2, L2 = 5, 50
    x2 = jax.random.normal(jax.random.PRNGKey(1), (B2, 1, L2), dtype=jnp.float32)
    ref2 = jax.block_until_ready(_reference(x2, n_tokens, window_size))
    tok2 = jax.block_until_ready(
        sax_tokenize(x2, n_tokens, window_size, exact_bucketize=True))
    assert tok2.shape == (B2, L2 // window_size)
    np.testing.assert_array_equal(np.asarray(tok2), np.asarray(ref2))

    # Native bf16 input (cast to f32 per tile inside the kernel); tokens may
    # shift by one near breakpoint boundaries due to input quantization.
    tok2_bf16 = jax.block_until_ready(
        sax_tokenize(x2.astype(jnp.bfloat16), n_tokens, window_size))
    assert int(jnp.max(jnp.abs(tok2_bf16 - ref2))) <= 1

    print("KERNEL_OK")
</pallas_src>

<mosaic_0001>
module attributes {stable_mosaic.version = 11 : i64} {
  func.func @kernel(%arg0: i32, %arg1: memref<32x48xf32, #tpu.memory_space<vmem>>, %arg2: memref<48x128xf32, #tpu.memory_space<vmem>>, %arg3: memref<31xf32, #tpu.memory_space<smem>>, %arg4: memref<32x128xi8, #tpu.memory_space<vmem>>) attributes {dimension_semantics = [#tpu.dimension_semantics<parallel>], iteration_bounds = array<i64: 1>, scalar_prefetch = 0 : i64, scratch_operands = 0 : i64, tpu.core_type = #tpu.core_type<tc>, window_params = [{transform_indices = @transform_0, window_bounds = array<i64: 32, 48>}, {pipeline_mode = #tpu.pipeline_mode<synchronous>, transform_indices = @transform_1, window_bounds = array<i64: 48, 128>}, {transform_indices = @transform_2, window_bounds = array<i64: 31>}, {transform_indices = @transform_3, window_bounds = array<i64: 32, 128>}]} {
    %c0 = arith.constant 0 : index
    %c0_0 = arith.constant 0 : index
    %0 = vector.load %arg1[%c0, %c0_0] : memref<32x48xf32, #tpu.memory_space<vmem>>, vector<32x48xf32>
    %cst = arith.constant dense<0.000000e+00> : vector<32xf32>
    %1 = vector.multi_reduction <add>, %0, %cst [1] : vector<32x48xf32> to vector<32xf32>
    %2 = vector.shape_cast %1 : vector<32xf32> to vector<32x1xf32>
    %3 = arith.mulf %0, %0 : vector<32x48xf32>
    %cst_1 = arith.constant dense<0.000000e+00> : vector<32xf32>
    %4 = vector.multi_reduction <add>, %3, %cst_1 [1] : vector<32x48xf32> to vector<32xf32>
    %5 = vector.shape_cast %4 : vector<32xf32> to vector<32x1xf32>
    %cst_2 = arith.constant 0.020833334 : f32
    %6 = vector.broadcast %cst_2 : f32 to vector<32x1xf32>
    %7 = arith.mulf %2, %6 : vector<32x1xf32>
    %8 = arith.mulf %2, %7 : vector<32x1xf32>
    %9 = arith.subf %5, %8 : vector<32x1xf32>
    %cst_3 = arith.constant 0.0212765951 : f32
    %10 = vector.broadcast %cst_3 : f32 to vector<32x1xf32>
    %11 = arith.mulf %9, %10 : vector<32x1xf32>
    %cst_4 = arith.constant 0.000000e+00 : f32
    %12 = vector.broadcast %cst_4 : f32 to vector<32x1xf32>
    %13 = arith.maximumf %11, %12 : vector<32x1xf32>
    %14 = math.sqrt %13 : vector<32x1xf32>
    %cst_5 = arith.constant 9.99999993E-9 : f32
    %15 = vector.broadcast %cst_5 : f32 to vector<32x1xf32>
    %16 = arith.addf %14, %15 : vector<32x1xf32>
    %cst_6 = arith.constant 1.000000e+00 : f32
    %17 = vector.broadcast %cst_6 : f32 to vector<32x1xf32>
    %18 = arith.divf %17, %16 : vector<32x1xf32>
    %c0_7 = arith.constant 0 : index
    %c0_8 = arith.constant 0 : index
    %19 = vector.load %arg2[%c0_7, %c0_8] : memref<48x128xf32, #tpu.memory_space<vmem>>, vector<48x128xf32>
    %cst_9 = arith.constant dense<0.000000e+00> : vector<32x128xf32>
    %20 = tpu.matmul %0, %19, %cst_9 {dimension_numbers = #tpu.dot_dimension_numbers<[1], [0], [0], [1], [0, 0, 1, 1], [], []>} : vector<32x48xf32>, vector<48x128xf32>, vector<32x128xf32> -> vector<32x128xf32>
    %21 = vector.broadcast %7 : vector<32x1xf32> to vector<32x128xf32>
    %22 = arith.subf %20, %21 : vector<32x128xf32>
    %23 = vector.broadcast %18 : vector<32x1xf32> to vector<32x128xf32>
    %24 = arith.mulf %22, %23 : vector<32x128xf32>
    %cst_10 = arith.constant 0.707106769 : f32
    %25 = vector.broadcast %cst_10 : f32 to vector<32x128xf32>
    %26 = arith.mulf %24, %25 : vector<32x128xf32>
    %27 = math.absf %26 : vector<32x128xf32>
    %cst_11 = arith.constant 0.327591091 : f32
    %28 = vector.broadcast %cst_11 : f32 to vector<32x128xf32>
    %29 = arith.mulf %28, %27 : vector<32x128xf32>
    %cst_12 = arith.constant 1.000000e+00 : f32
    %30 = vector.broadcast %cst_12 : f32 to vector<32x128xf32>
    %31 = arith.addf %30, %29 : vector<32x128xf32>
    %cst_13 = arith.constant 1.000000e+00 : f32
    %32 = vector.broadcast %cst_13 : f32 to vector<32x128xf32>
    %33 = arith.divf %32, %31 : vector<32x128xf32>
    %cst_14 = arith.constant 1.06140542 : f32
    %34 = vector.broadcast %cst_14 : f32 to vector<32x128xf32>
    %35 = arith.mulf %33, %34 : vector<32x128xf32>
    %cst_15 = arith.constant -1.45315206 : f32
    %36 = vector.broadcast %cst_15 : f32 to vector<32x128xf32>
    %37 = arith.addf %36, %35 : vector<32x128xf32>
    %38 = arith.mulf %33, %37 : vector<32x128xf32>
    %cst_16 = arith.constant 1.42141378 : f32
    %39 = vector.broadcast %cst_16 : f32 to vector<32x128xf32>
    %40 = arith.addf %39, %38 : vector<32x128xf32>
    %41 = arith.mulf %33, %40 : vector<32x128xf32>
    %cst_17 = arith.constant -0.284496725 : f32
    %42 = vector.broadcast %cst_17 : f32 to vector<32x128xf32>
    %43 = arith.addf %42, %41 : vector<32x128xf32>
    %44 = arith.mulf %33, %43 : vector<32x128xf32>
    %cst_18 = arith.constant 0.254829586 : f32
    %45 = vector.broadcast %cst_18 : f32 to vector<32x128xf32>
    %46 = arith.addf %45, %44 : vector<32x128xf32>
    %47 = arith.mulf %33, %46 : vector<32x128xf32>
    %cst_19 = arith.constant 0.000000e+00 : f32
    %48 = vector.broadcast %cst_19 : f32 to vector<32x128xf32>
    %49 = arith.subf %48, %27 : vector<32x128xf32>
    %50 = arith.mulf %49, %27 : vector<32x128xf32>
    %51 = math.exp %50 : vector<32x128xf32>
    %52 = arith.mulf %47, %51 : vector<32x128xf32>
    %cst_20 = arith.constant 1.000000e+00 : f32
    %53 = vector.broadcast %cst_20 : f32 to vector<32x128xf32>
    %54 = arith.subf %53, %52 : vector<32x128xf32>
    %cst_21 = arith.constant 0.000000e+00 : f32
    %55 = vector.broadcast %cst_21 : f32 to vector<32x128xf32>
    %56 = arith.cmpf olt, %26, %55 : vector<32x128xf32>
    %cst_22 = arith.constant 0.000000e+00 : f32
    %57 = vector.broadcast %cst_22 : f32 to vector<32x128xf32>
    %58 = arith.subf %57, %54 : vector<32x128xf32>
    %59 = arith.select %56, %58, %54 : vector<32x128xi1>, vector<32x128xf32>
    %cst_23 = arith.constant 1.000000e+00 : f32
    %60 = vector.broadcast %cst_23 : f32 to vector<32x128xf32>
    %61 = arith.addf %60, %59 : vector<32x128xf32>
    %cst_24 = arith.constant 5.000000e-01 : f32
    %62 = vector.broadcast %cst_24 : f32 to vector<32x128xf32>
    %63 = arith.mulf %62, %61 : vector<32x128xf32>
    %cst_25 = arith.constant 3.200000e+01 : f32
    %64 = vector.broadcast %cst_25 : f32 to vector<32x128xf32>
    %65 = arith.mulf %63, %64 : vector<32x128xf32>
    %66 = math.floor %65 : vector<32x128xf32>
    %cst_26 = arith.constant 0.000000e+00 : f32
    %cst_27 = arith.constant 3.100000e+01 : f32
    %67 = vector.broadcast %cst_26 : f32 to vector<32x128xf32>
    %68 = arith.maximumf %67, %66 : vector<32x128xf32>
    %69 = vector.broadcast %cst_27 : f32 to vector<32x128xf32>
    %70 = arith.minimumf %69, %68 : vector<32x128xf32>
    %71 = arith.fptosi %70 : vector<32x128xf32> to vector<32x128xi32>
    %72 = arith.trunci %71 : vector<32x128xi32> to vector<32x128xi8>
    %c0_28 = arith.constant 0 : index
    %c0_29 = arith.constant 0 : index
    %73 = vector.load %arg4[%c0_28, %c0_29] : memref<32x128xi8, #tpu.memory_space<vmem>>, vector<32x128xi8>
    tpu.vector_store %arg4[%c0_28, %c0_29], %72 {strides = array<i32>} : memref<32x128xi8, #tpu.memory_space<vmem>>, vector<32x128xi8>,
    return
  }
  func.func @transform_0(%arg0: i32) -> (i32, i32) {
    %c0_i32 = arith.constant 0 : i32
    %c0_i32_0 = arith.constant 0 : i32
    return %arg0, %c0_i32 : i32, i32
  }
  func.func @transform_1(%arg0: i32) -> (i32, i32) {
    %c0_i32 = arith.constant 0 : i32
    %c0_i32_0 = arith.constant 0 : i32
    %c0_i32_1 = arith.constant 0 : i32
    return %c0_i32, %c0_i32_0 : i32, i32
  }
  func.func @transform_2(%arg0: i32) -> i32 {
    %c0_i32 = arith.constant 0 : i32
    %c0_i32_0 = arith.constant 0 : i32
    return %c0_i32 : i32
  }
  func.func @transform_3(%arg0: i32) -> (i32, i32) {
    %c0_i32 = arith.constant 0 : i32
    %c0_i32_0 = arith.constant 0 : i32
    return %arg0, %c0_i32 : i32, i32
  }
}

module attributes {stable_mosaic.version = 11 : i64} {
  func.func @kernel(%arg0: i32, %arg1: memref<32x48xf32, #tpu.memory_space<vmem>>, %arg2: memref<48x128xf32, #tpu.memory_space<vmem>>, %arg3: memref<31xf32, #tpu.memory_space<smem>>, %arg4: memref<32x128xi8, #tpu.memory_space<vmem>>) attributes {dimension_semantics = [#tpu.dimension_semantics<parallel>], iteration_bounds = array<i64: 1>, scalar_prefetch = 0 : i64, scratch_operands = 0 : i64, tpu.core_type = #tpu.core_type<tc>, window_params = [{transform_indices = @transform_0, window_bounds = array<i64: 32, 48>}, {pipeline_mode = #tpu.pipeline_mode<synchronous>, transform_indices = @transform_1, window_bounds = array<i64: 48, 128>}, {transform_indices = @transform_2, window_bounds = array<i64: 31>}, {transform_indices = @transform_3, window_bounds = array<i64: 32, 128>}]} {
    %c0 = arith.constant 0 : index
    %c0_0 = arith.constant 0 : index
    %0 = vector.load %arg1[%c0, %c0_0] : memref<32x48xf32, #tpu.memory_space<vmem>>, vector<32x48xf32>
    %cst = arith.constant dense<0.000000e+00> : vector<32xf32>
    %1 = vector.multi_reduction <add>, %0, %cst [1] : vector<32x48xf32> to vector<32xf32>
    %2 = vector.shape_cast %1 : vector<32xf32> to vector<32x1xf32>
    %3 = arith.mulf %0, %0 : vector<32x48xf32>
    %cst_1 = arith.constant dense<0.000000e+00> : vector<32xf32>
    %4 = vector.multi_reduction <add>, %3, %cst_1 [1] : vector<32x48xf32> to vector<32xf32>
    %5 = vector.shape_cast %4 : vector<32xf32> to vector<32x1xf32>
    %cst_2 = arith.constant 0.020833334 : f32
    %6 = vector.broadcast %cst_2 : f32 to vector<32x1xf32>
    %7 = arith.mulf %2, %6 : vector<32x1xf32>
    %8 = arith.mulf %2, %7 : vector<32x1xf32>
    %9 = arith.subf %5, %8 : vector<32x1xf32>
    %cst_3 = arith.constant 0.0212765951 : f32
    %10 = vector.broadcast %cst_3 : f32 to vector<32x1xf32>
    %11 = arith.mulf %9, %10 : vector<32x1xf32>
    %cst_4 = arith.constant 0.000000e+00 : f32
    %12 = vector.broadcast %cst_4 : f32 to vector<32x1xf32>
    %13 = arith.maximumf %11, %12 : vector<32x1xf32>
    %14 = math.sqrt %13 : vector<32x1xf32>
    %cst_5 = arith.constant 9.99999993E-9 : f32
    %15 = vector.broadcast %cst_5 : f32 to vector<32x1xf32>
    %16 = arith.addf %14, %15 : vector<32x1xf32>
    %cst_6 = arith.constant 1.000000e+00 : f32
    %17 = vector.broadcast %cst_6 : f32 to vector<32x1xf32>
    %18 = arith.divf %17, %16 : vector<32x1xf32>
    %c0_7 = arith.constant 0 : index
    %c0_8 = arith.constant 0 : index
    %19 = vector.load %arg2[%c0_7, %c0_8] : memref<48x128xf32, #tpu.memory_space<vmem>>, vector<48x128xf32>
    %cst_9 = arith.constant dense<0.000000e+00> : vector<32x128xf32>
    %20 = tpu.matmul %0, %19, %cst_9 {dimension_numbers = #tpu.dot_dimension_numbers<[1], [0], [0], [1], [0, 0, 1, 1], [], []>} : vector<32x48xf32>, vector<48x128xf32>, vector<32x128xf32> -> vector<32x128xf32>
    %21 = vector.broadcast %7 : vector<32x1xf32> to vector<32x128xf32>
    %22 = arith.subf %20, %21 : vector<32x128xf32>
    %23 = vector.broadcast %18 : vector<32x1xf32> to vector<32x128xf32>
    %24 = arith.mulf %22, %23 : vector<32x128xf32>
    %cst_10 = arith.constant 0.707106769 : f32
    %25 = vector.broadcast %cst_10 : f32 to vector<32x128xf32>
    %26 = arith.mulf %24, %25 : vector<32x128xf32>
    %27 = math.absf %26 : vector<32x128xf32>
    %cst_11 = arith.constant 0.327591091 : f32
    %28 = vector.broadcast %cst_11 : f32 to vector<32x128xf32>
    %29 = arith.mulf %28, %27 : vector<32x128xf32>
    %cst_12 = arith.constant 1.000000e+00 : f32
    %30 = vector.broadcast %cst_12 : f32 to vector<32x128xf32>
    %31 = arith.addf %30, %29 : vector<32x128xf32>
    %cst_13 = arith.constant 1.000000e+00 : f32
    %32 = vector.broadcast %cst_13 : f32 to vector<32x128xf32>
    %33 = arith.divf %32, %31 : vector<32x128xf32>
    %cst_14 = arith.constant 1.06140542 : f32
    %34 = vector.broadcast %cst_14 : f32 to vector<32x128xf32>
    %35 = arith.mulf %33, %34 : vector<32x128xf32>
    %cst_15 = arith.constant -1.45315206 : f32
    %36 = vector.broadcast %cst_15 : f32 to vector<32x128xf32>
    %37 = arith.addf %36, %35 : vector<32x128xf32>
    %38 = arith.mulf %33, %37 : vector<32x128xf32>
    %cst_16 = arith.constant 1.42141378 : f32
    %39 = vector.broadcast %cst_16 : f32 to vector<32x128xf32>
    %40 = arith.addf %39, %38 : vector<32x128xf32>
    %41 = arith.mulf %33, %40 : vector<32x128xf32>
    %cst_17 = arith.constant -0.284496725 : f32
    %42 = vector.broadcast %cst_17 : f32 to vector<32x128xf32>
    %43 = arith.addf %42, %41 : vector<32x128xf32>
    %44 = arith.mulf %33, %43 : vector<32x128xf32>
    %cst_18 = arith.constant 0.254829586 : f32
    %45 = vector.broadcast %cst_18 : f32 to vector<32x128xf32>
    %46 = arith.addf %45, %44 : vector<32x128xf32>
    %47 = arith.mulf %33, %46 : vector<32x128xf32>
    %cst_19 = arith.constant 0.000000e+00 : f32
    %48 = vector.broadcast %cst_19 : f32 to vector<32x128xf32>
    %49 = arith.subf %48, %27 : vector<32x128xf32>
    %50 = arith.mulf %49, %27 : vector<32x128xf32>
    %51 = math.exp %50 : vector<32x128xf32>
    %52 = arith.mulf %47, %51 : vector<32x128xf32>
    %cst_20 = arith.constant 1.000000e+00 : f32
    %53 = vector.broadcast %cst_20 : f32 to vector<32x128xf32>
    %54 = arith.subf %53, %52 : vector<32x128xf32>
    %cst_21 = arith.constant 0.000000e+00 : f32
    %55 = vector.broadcast %cst_21 : f32 to vector<32x128xf32>
    %56 = arith.cmpf olt, %26, %55 : vector<32x128xf32>
    %cst_22 = arith.constant 0.000000e+00 : f32
    %57 = vector.broadcast %cst_22 : f32 to vector<32x128xf32>
    %58 = arith.subf %57, %54 : vector<32x128xf32>
    %59 = arith.select %56, %58, %54 : vector<32x128xi1>, vector<32x128xf32>
    %cst_23 = arith.constant 1.000000e+00 : f32
    %60 = vector.broadcast %cst_23 : f32 to vector<32x128xf32>
    %61 = arith.addf %60, %59 : vector<32x128xf32>
    %cst_24 = arith.constant 5.000000e-01 : f32
    %62 = vector.broadcast %cst_24 : f32 to vector<32x128xf32>
    %63 = arith.mulf %62, %61 : vector<32x128xf32>
    %cst_25 = arith.constant 3.200000e+01 : f32
    %64 = vector.broadcast %cst_25 : f32 to vector<32x128xf32>
    %65 = arith.mulf %63, %64 : vector<32x128xf32>
    %66 = math.floor %65 : vector<32x128xf32>
    %cst_26 = arith.constant 0.000000e+00 : f32
    %cst_27 = arith.constant 3.100000e+01 : f32
    %67 = vector.broadcast %cst_26 : f32 to vector<32x128xf32>
    %68 = arith.maximumf %67, %66 : vector<32x128xf32>
    %69 = vector.broadcast %cst_27 : f32 to vector<32x128xf32>
    %70 = arith.minimumf %69, %68 : vector<32x128xf32>
    %71 = arith.fptosi %70 : vector<32x128xf32> to vector<32x128xi32>
    %72 = arith.trunci %71 : vector<32x128xi32> to vector<32x128xi8>
    %c0_28 = arith.constant 0 : index
    %c0_29 = arith.constant 0 : index
    %73 = vector.load %arg4[%c0_28, %c0_29] : memref<32x128xi8, #tpu.memory_space<vmem>>, vector<32x128xi8>
    tpu.vector_store %arg4[%c0_28, %c0_29], %72 {strides = array<i32>} : memref<32x128xi8, #tpu.memory_space<vmem>>, vector<32x128xi8>,
    return
  }
  func.func @transform_0(%arg0: i32) -> (i32, i32) {
    %c0_i32 = arith.constant 0 : i32
    %c0_i32_0 = arith.constant 0 : i32
    return %arg0, %c0_i32 : i32, i32
  }
  func.func @transform_1(%arg0: i32) -> (i32, i32) {
    %c0_i32 = arith.constant 0 : i32
    %c0_i32_0 = arith.constant 0 : i32
    %c0_i32_1 = arith.constant 0 : i32
    return %c0_i32, %c0_i32_0 : i32, i32
  }
  func.func @transform_2(%arg0: i32) -> i32 {
    %c0_i32 = arith.constant 0 : i32
    %c0_i32_0 = arith.constant 0 : i32
    return %c0_i32 : i32
  }
  func.func @transform_3(%arg0: i32) -> (i32, i32) {
    %c0_i32 = arith.constant 0 : i32
    %c0_i32_0 = arith.constant 0 : i32
    return %arg0, %c0_i32 : i32, i32
  }
}

</mosaic_0001>

<llo_original>
// kernel: tpu_custom_call.1
$region0: #{tpu_custom_call.1}
  #allocation0 [shape = 'u32[]', space=smem, size = 0x4, offset = 0x4, fixed_abs, tag = 'smem constant byte address 0x4 - core index']
  #allocation1 [shape = 'u32[72,128]{1,0:T(1,128)}', space=vmem, size = 0x9000, scoped, tag = 'internal scratch']
  %s0 = inlined_call_operand.hbm [shape: f32[32,48], index: 0, kind: input, shape index: {}]
  %s1 = inlined_call_operand.hbm [shape: f32[48,128], index: 1, kind: input, shape index: {}]
  %s2 = inlined_call_operand.vmem [shape: f32[31], index: 2, kind: input, shape index: {}]
  %s3 = inlined_call_operand.hbm [shape: s8[32,128], index: 3, kind: output, shape index: {}]
  %s4 = sld [smem:[#allocation0]]
  $region34: #{tpu_custom_call.1} parent=0
    _
  %s6 = ssub.s32 1, %s4
  %s7 = scalar_select 0, %s6, %s4
  $region1: #{tpu_custom_call.1} parent=0
    #allocation2 [shape = 'u8[16384]{0}', space=vmem, size = 0x4000, scoped, tag = 'input window, operand 0, single buffered']
    #allocation3 [shape = 's32[1]{0}', space=sflag, size = 0x4, scoped, tag = 'scoped memory for tpu_custom_call.1']
    #allocation4 [shape = 's32[1]{0}', space=sflag, size = 0x4, scoped, tag = 'scoped memory for tpu_custom_call.1']
    #allocation5 [shape = 's32[1]{0}', space=sflag, size = 0x4, scoped, tag = 'scoped memory for tpu_custom_call.1']
    #allocation6 [shape = 'u8[24576]{0}', space=vmem, size = 0x6000, scoped, tag = 'input window, operand 1, single buffered']
    #allocation7 [shape = 's32[1]{0}', space=sflag, size = 0x4, scoped, tag = 'scoped memory for tpu_custom_call.1']
    #allocation8 [shape = 'u8[512]{0}', space=smem, size = 0x200, scoped, tag = 'input window, operand 2, single buffered']
    #allocation9 [shape = 'u8[4096]{0}', space=vmem, size = 0x1000, scoped, tag = 'output window, operand 0, single buffered']
    %8 = vsyncpa [#allocation3], 0
    %9 = vsyncpa [#allocation7], 0
    %10 = vsyncpa [#allocation5], 0
    %11 = vsyncpa [#allocation4], 0
    // Predicated region
    $region2: #{tpu_custom_call.1} parent=1 // pred_check
      _
    $region3: #{tpu_custom_call.1} parent=1 // pred_check_branch
      %13 = sbr.rel (0) target = $region5
    $region4: #{tpu_custom_call.1} parent=1 // pred_region
      %15 = vsyncadd [#allocation3], 0
      %s16 = sshll.u32 %s0, 4
      %s17 = int_to_ptr.hbm [resolvable:$true] %s16
      %s18 = sshll.u32 [#allocation2], 4
      %s19 = int_to_ptr.vmem [resolvable:$true] %s18
      %24 = dma.hbm_to_vmem [thread:$0]  %s17, 512, %s19, [#allocation3], 128, 128, 8
    $region5: #{tpu_custom_call.1} parent=1 // pred_fallthru
      _
    // Predicated region
    $region6: #{tpu_custom_call.1} parent=1 // pred_check
      _
    $region7: #{tpu_custom_call.1} parent=1 // pred_check_branch
      %26 = sbr.rel (0) target = $region9
    $region8: #{tpu_custom_call.1} parent=1 // pred_region
      %28 = vsyncadd [#allocation7], 0
      %s29 = sshll.u32 %s1, 4
      %s30 = int_to_ptr.hbm [resolvable:$true] %s29
      %s31 = sshll.u32 [#allocation6], 4
      %s32 = int_to_ptr.vmem [resolvable:$true] %s31
      %37 = dma.hbm_to_vmem [thread:$0]  %s30, 768, %s32, [#allocation7], 128, 128, 8
    $region9: #{tpu_custom_call.1} parent=1 // pred_fallthru
      _
    // Predicated region
    $region10: #{tpu_custom_call.1} parent=1 // pred_check
      _
    $region11: #{tpu_custom_call.1} parent=1 // pred_check_branch
      %39 = sbr.rel (0) target = $region13
    $region12: #{tpu_custom_call.1} parent=1 // pred_region
      %41 = vsyncadd [#allocation5], 0
      %s43 = sshll.u32 %s2, 4
      %s44 = int_to_ptr.vmem [resolvable:$true] %s43
      %46 = dma.vmem_to_smem %s44, 16, [#allocation8], [#allocation5]
    $region13: #{tpu_custom_call.1} parent=1 // pred_fallthru
      _
    // Predicated region
    $region14: #{tpu_custom_call.1} parent=1 // pred_check
      _
    $region15: #{tpu_custom_call.1} parent=1 // pred_check_branch
      %48 = sbr.rel (0) target = $region17
    $region16: #{tpu_custom_call.1} parent=1 // pred_region
      %50 = dma.done [#allocation3], 512
    $region17: #{tpu_custom_call.1} parent=1 // pred_fallthru
      _
    // Predicated region
    $region18: #{tpu_custom_call.1} parent=1 // pred_check
      _
    $region19: #{tpu_custom_call.1} parent=1 // pred_check_branch
      %52 = sbr.rel (0) target = $region21
    $region20: #{tpu_custom_call.1} parent=1 // pred_region
      %54 = dma.done [#allocation7], 768
    $region21: #{tpu_custom_call.1} parent=1 // pred_fallthru
      _
    // Predicated region
    $region22: #{tpu_custom_call.1} parent=1 // pred_check
      _
    $region23: #{tpu_custom_call.1} parent=1 // pred_check_branch
      %56 = sbr.rel (0) target = $region25
    $region24: #{tpu_custom_call.1} parent=1 // pred_region
      %58 = dma.done [#allocation5], 16
    $region25: #{tpu_custom_call.1} parent=1 // pred_fallthru
      _
    %59 = sfence
    %v60 = vld [vmem:[#allocation2] sm:$0xff]
    %v61 = vld [vmem:[#allocation2 + $0x8] sm:$0xff]
    %v62 = vld [vmem:[#allocation2 + $0x10] sm:$0xff]
    %v63 = vld [vmem:[#allocation2 + $0x18] sm:$0xff]
    %vm64 = vcmask 392192
    %v65 = vsel %vm64, %v60, 0.0
    %66 = vadd.xlane.f32.xlu0 %v65
    %v67 = vpop.xlane.xlu0 %66
    %v68 = vsel %vm64, %v61, 0.0
    %69 = vadd.xlane.f32.xlu0 %v68
    %v70 = vpop.xlane.xlu0 %69
    %v71 = vsel %vm64, %v62, 0.0
    %72 = vadd.xlane.f32.xlu0 %v71
    %v73 = vpop.xlane.xlu0 %72
    %v74 = vsel %vm64, %v63, 0.0
    %75 = vadd.xlane.f32.xlu0 %v74
    %v76 = vpop.xlane.xlu0 %75
    %v77 = vmul.f32 %v60, %v60
    %v78 = vmul.f32 %v61, %v61
    %v79 = vmul.f32 %v62, %v62
    %v80 = vmul.f32 %v63, %v63
    %v81 = vsel %vm64, %v77, 0.0
    %82 = vadd.xlane.f32.xlu0 %v81
    %v83 = vpop.xlane.xlu0 %82
    %v84 = vsel %vm64, %v78, 0.0
    %85 = vadd.xlane.f32.xlu0 %v84
    %v86 = vpop.xlane.xlu0 %85
    %v87 = vsel %vm64, %v79, 0.0
    %88 = vadd.xlane.f32.xlu0 %v87
    %v89 = vpop.xlane.xlu0 %88
    %v90 = vsel %vm64, %v80, 0.0
    %91 = vadd.xlane.f32.xlu0 %v90
    %v92 = vpop.xlane.xlu0 %91
    %v93 = vmul.f32 %v67, 0.020833334
    %v94 = vmul.f32 %v70, 0.020833334
    %v95 = vmul.f32 %v73, 0.020833334
    %v96 = vmul.f32 %v76, 0.020833334
    %v97 = vmul.f32 %v67, %v93
    %v98 = vmul.f32 %v70, %v94
    %v99 = vmul.f32 %v73, %v95
    %v100 = vmul.f32 %v76, %v96
    %v101 = vsub.f32 %v83, %v97
    %v102 = vsub.f32 %v86, %v98
    %v103 = vsub.f32 %v89, %v99
    %v104 = vsub.f32 %v92, %v100
    %v105 = vmul.f32 %v101, 0.021276595
    %v106 = vmul.f32 %v102, 0.021276595
    %v107 = vmul.f32 %v103, 0.021276595
    %v108 = vmul.f32 %v104, 0.021276595
    %v109 = vmax.f32 %v105, 0.0
    %v110 = vmax.f32 %v106, 0.0
    %v111 = vmax.f32 %v107, 0.0
    %v112 = vmax.f32 %v108, 0.0
    %v113 = vrsqrt.pop %v109
    %v114 = vmul.f32 %v113, %v109
    %v115 = vmul.f32 %v114, %v113
    %v116 = vmul.f32 0.5, %v115
    %v117 = vsub.f32 1.5, %v116
    %v118 = vmul.f32 %v113, %v117
    %v119 = vmul.f32 %v109, %v118
    %vm120 = vcmp.eq.f32.partialorder %v109, inf
    %v121 = vsel %vm120, %v109, %v119
    %vm122 = vcmp.eq.f32.partialorder %v109, 0.0
    %v123 = vand.u32 %v109, 2147483648
    %v124 = vsel %vm122, %v123, %v121
    %v125 = vrsqrt.pop %v110
    %v126 = vmul.f32 %v125, %v110
    %v127 = vmul.f32 %v126, %v125
    %v128 = vmul.f32 0.5, %v127
    %v129 = vsub.f32 1.5, %v128
    %v130 = vmul.f32 %v125, %v129
    %v131 = vmul.f32 %v110, %v130
    %vm132 = vcmp.eq.f32.partialorder %v110, inf
    %v133 = vsel %vm132, %v110, %v131
    %vm134 = vcmp.eq.f32.partialorder %v110, 0.0
    %v135 = vand.u32 %v110, 2147483648
    %v136 = vsel %vm134, %v135, %v133
    %v137 = vrsqrt.pop %v111
    %v138 = vmul.f32 %v137, %v111
    %v139 = vmul.f32 %v138, %v137
    %v140 = vmul.f32 0.5, %v139
    %v141 = vsub.f32 1.5, %v140
    %v142 = vmul.f32 %v137, %v141
    %v143 = vmul.f32 %v111, %v142
    %vm144 = vcmp.eq.f32.partialorder %v111, inf
    %v145 = vsel %vm144, %v111, %v143
    %vm146 = vcmp.eq.f32.partialorder %v111, 0.0
    %v147 = vand.u32 %v111, 2147483648
    %v148 = vsel %vm146, %v147, %v145
    %v149 = vrsqrt.pop %v112
    %v150 = vmul.f32 %v149, %v112
    %v151 = vmul.f32 %v150, %v149
    %v152 = vmul.f32 0.5, %v151
    %v153 = vsub.f32 1.5, %v152
    %v154 = vmul.f32 %v149, %v153
    %v155 = vmul.f32 %v112, %v154
    %vm156 = vcmp.eq.f32.partialorder %v112, inf
    %v157 = vsel %vm156, %v112, %v155
    %vm158 = vcmp.eq.f32.partialorder %v112, 0.0
    %v159 = vand.u32 %v112, 2147483648
    %v160 = vsel %vm158, %v159, %v157
    %v161 = vadd.f32 %v124, 1e-08
    %v162 = vadd.f32 %v136, 1e-08
    %v163 = vadd.f32 %v148, 1e-08
    %v164 = vadd.f32 %v160, 1e-08
    %v165 = vrcp.pop %v161
    %v166 = vmul.f32 %v161, %v165
    %v167 = vsub.f32 1.0, %v166
    %v168 = vmul.f32 %v165, %v167
    %v169 = vadd.f32 %v165, %v168
    %vm170 = vweird.f32 %v161
    %vm171 = vweird.f32 %v165
    %vm172 = vmor %vm170, %vm171
    %v173 = vsel %vm172, %v165, %v169
    %v174 = vand.u32 2147483647, %v161
    %vm175 = vcmp.eq.f32.partialorder %v174, 8.507059e+37
    %v176 = vand.u32 %v161, 2147483648
    %v177 = vor.u32 1.1754944e-38, %v176
    %v178 = vsel %vm175, %v177, %v173
    %v179 = vmul.f32 1.0, %v178
    %v180 = vrcp.pop %v162
    %v181 = vmul.f32 %v162, %v180
    %v182 = vsub.f32 1.0, %v181
    %v183 = vmul.f32 %v180, %v182
    %v184 = vadd.f32 %v180, %v183
    %vm185 = vweird.f32 %v162
    %vm186 = vweird.f32 %v180
    %vm187 = vmor %vm185, %vm186
    %v188 = vsel %vm187, %v180, %v184
    %v189 = vand.u32 2147483647, %v162
    %vm190 = vcmp.eq.f32.partialorder %v189, 8.507059e+37
    %v191 = vand.u32 %v162, 2147483648
    %v192 = vor.u32 1.1754944e-38, %v191
    %v193 = vsel %vm190, %v192, %v188
    %v194 = vmul.f32 1.0, %v193
    %v195 = vrcp.pop %v163
    %v196 = vmul.f32 %v163, %v195
    %v197 = vsub.f32 1.0, %v196
    %v198 = vmul.f32 %v195, %v197
    %v199 = vadd.f32 %v195, %v198
    %vm200 = vweird.f32 %v163
    %vm201 = vweird.f32 %v195
    %vm202 = vmor %vm200, %vm201
    %v203 = vsel %vm202, %v195, %v199
    %v204 = vand.u32 2147483647, %v163
    %vm205 = vcmp.eq.f32.partialorder %v204, 8.507059e+37
    %v206 = vand.u32 %v163, 2147483648
    %v207 = vor.u32 1.1754944e-38, %v206
    %v208 = vsel %vm205, %v207, %v203
    %v209 = vmul.f32 1.0, %v208
    %v210 = vrcp.pop %v164
    %v211 = vmul.f32 %v164, %v210
    %v212 = vsub.f32 1.0, %v211
    %v213 = vmul.f32 %v210, %v212
    %v214 = vadd.f32 %v210, %v213
    %vm215 = vweird.f32 %v164
    %vm216 = vweird.f32 %v210
    %vm217 = vmor %vm215, %vm216
    %v218 = vsel %vm217, %v210, %v214
    %v219 = vand.u32 2147483647, %v164
    %vm220 = vcmp.eq.f32.partialorder %v219, 8.507059e+37
    %v221 = vand.u32 %v164, 2147483648
    %v222 = vor.u32 1.1754944e-38, %v221
    %v223 = vsel %vm220, %v222, %v218
    %v224 = vmul.f32 1.0, %v223
    %v225 = vld [vmem:[#allocation6] sm:$0xff]
    %v226 = vld [vmem:[#allocation6 + $0x8] sm:$0xff]
    %v227 = vld [vmem:[#allocation6 + $0x10] sm:$0xff]
    %v228 = vld [vmem:[#allocation6 + $0x18] sm:$0xff]
    %v229 = vld [vmem:[#allocation6 + $0x20] sm:$0xff]
    %v230 = vld [vmem:[#allocation6 + $0x28] sm:$0xff]
    %v232 = vsel %vm64, %v60, 0
    %v235 = vsel %vm64, %v61, 0
    %v238 = vsel %vm64, %v62, 0
    %v241 = vsel %vm64, %v63, 0
    %243 = vmatpush.msra.mxu0 0.0
    %244 = vmatpush.msra.mxu0 0.0
    %245 = vmatpush.msra.mxu0 0.0
    %246 = vmatpush.msra.mxu0 0.0
    %247 = vmatpush.msra.mxu0 0.0
    %248 = vmatpush.msra.mxu0 0.0
    %249 = vmatpush.msra.mxu0 0.0
    %250 = vmatpush.msra.mxu0 0.0
    %251 = vmatpush.msra.mxu0 0.0
    %252 = vmatpush.msra.mxu0 0.0
    %253 = vmatpush.msra.mxu0 %v230
    %254 = vmatpush.msra.mxu0 %v229
    %255 = vmatpush.msra.mxu0 %v228
    %256 = vmatpush.msra.mxu0 %v227
    %257 = vmatpush.msra.mxu0 %v226
    %258 = vmatpush.msra.mxu0 %v225
    %259 = vmatmul.f32.gmra.mxu0 %v232
    %v260 = vpop.f32.mrf.mxu0
    %v261 = vadd.f32 0.0, %v260
    %262 = vmatmul.f32.gmra.mxu0 %v235
    %v263 = vpop.f32.mrf.mxu0
    %v264 = vadd.f32 0.0, %v263
    %265 = vmatmul.f32.gmra.mxu0 %v238
    %v266 = vpop.f32.mrf.mxu0
    %v267 = vadd.f32 0.0, %v266
    %268 = vmatmul.f32.gmra.mxu0 %v241
    %v269 = vpop.f32.mrf.mxu0
    %v270 = vadd.f32 0.0, %v269
    %271 = vdwg.mxu0
    %v272 = vsub.f32 %v261, %v93
    %v273 = vsub.f32 %v264, %v94
    %v274 = vsub.f32 %v267, %v95
    %v275 = vsub.f32 %v270, %v96
    %v276 = vmul.f32 %v272, %v179
    %v277 = vmul.f32 %v273, %v194
    %v278 = vmul.f32 %v274, %v209
    %v279 = vmul.f32 %v275, %v224
    %v280 = vmul.f32 %v276, 0.70710677
    %v281 = vmul.f32 %v277, 0.70710677
    %v282 = vmul.f32 %v278, 0.70710677
    %v283 = vmul.f32 %v279, 0.70710677
    %v284 = vand.u32 2147483647, %v280
    %v285 = vand.u32 2147483647, %v281
    %v286 = vand.u32 2147483647, %v282
    %v287 = vand.u32 2147483647, %v283
    %v288 = vmul.f32 %v284, 0.3275911
    %v289 = vmul.f32 %v285, 0.3275911
    %v290 = vmul.f32 %v286, 0.3275911
    %v291 = vmul.f32 %v287, 0.3275911
    %v292 = vadd.f32 %v288, 1.0
    %v293 = vadd.f32 %v289, 1.0
    %v294 = vadd.f32 %v290, 1.0
    %v295 = vadd.f32 %v291, 1.0
    %v296 = vrcp.pop %v292
    %v297 = vmul.f32 %v292, %v296
    %v298 = vsub.f32 1.0, %v297
    %v299 = vmul.f32 %v296, %v298
    %v300 = vadd.f32 %v296, %v299
    %vm301 = vweird.f32 %v292
    %vm302 = vweird.f32 %v296
    %vm303 = vmor %vm301, %vm302
    %v304 = vsel %vm303, %v296, %v300
    %v305 = vand.u32 2147483647, %v292
    %vm306 = vcmp.eq.f32.partialorder %v305, 8.507059e+37
    %v307 = vand.u32 %v292, 2147483648
    %v308 = vor.u32 1.1754944e-38, %v307
    %v309 = vsel %vm306, %v308, %v304
    %v310 = vmul.f32 1.0, %v309
    %v311 = vrcp.pop %v293
    %v312 = vmul.f32 %v293, %v311
    %v313 = vsub.f32 1.0, %v312
    %v314 = vmul.f32 %v311, %v313
    %v315 = vadd.f32 %v311, %v314
    %vm316 = vweird.f32 %v293
    %vm317 = vweird.f32 %v311
    %vm318 = vmor %vm316, %vm317
    %v319 = vsel %vm318, %v311, %v315
    %v320 = vand.u32 2147483647, %v293
    %vm321 = vcmp.eq.f32.partialorder %v320, 8.507059e+37
    %v322 = vand.u32 %v293, 2147483648
    %v323 = vor.u32 1.1754944e-38, %v322
    %v324 = vsel %vm321, %v323, %v319
    %v325 = vmul.f32 1.0, %v324
    %v326 = vrcp.pop %v294
    %v327 = vmul.f32 %v294, %v326
    %v328 = vsub.f32 1.0, %v327
    %v329 = vmul.f32 %v326, %v328
    %v330 = vadd.f32 %v326, %v329
    %vm331 = vweird.f32 %v294
    %vm332 = vweird.f32 %v326
    %vm333 = vmor %vm331, %vm332
    %v334 = vsel %vm333, %v326, %v330
    %v335 = vand.u32 2147483647, %v294
    %vm336 = vcmp.eq.f32.partialorder %v335, 8.507059e+37
    %v337 = vand.u32 %v294, 2147483648
    %v338 = vor.u32 1.1754944e-38, %v337
    %v339 = vsel %vm336, %v338, %v334
    %v340 = vmul.f32 1.0, %v339
    %v341 = vrcp.pop %v295
    %v342 = vmul.f32 %v295, %v341
    %v343 = vsub.f32 1.0, %v342
    %v344 = vmul.f32 %v341, %v343
    %v345 = vadd.f32 %v341, %v344
    %vm346 = vweird.f32 %v295
    %vm347 = vweird.f32 %v341
    %vm348 = vmor %vm346, %vm347
    %v349 = vsel %vm348, %v341, %v345
    %v350 = vand.u32 2147483647, %v295
    %vm351 = vcmp.eq.f32.partialorder %v350, 8.507059e+37
    %v352 = vand.u32 %v295, 2147483648
    %v353 = vor.u32 1.1754944e-38, %v352
    %v354 = vsel %vm351, %v353, %v349
    %v355 = vmul.f32 1.0, %v354
    %v356 = vmul.f32 %v310, 1.0614054
    %v357 = vmul.f32 %v325, 1.0614054
    %v358 = vmul.f32 %v340, 1.0614054
    %v359 = vmul.f32 %v355, 1.0614054
    %v360 = vadd.f32 %v356, -1.4531521
    %v361 = vadd.f32 %v357, -1.4531521
    %v362 = vadd.f32 %v358, -1.4531521
    %v363 = vadd.f32 %v359, -1.4531521
    %v364 = vmul.f32 %v310, %v360
    %v365 = vmul.f32 %v325, %v361
    %v366 = vmul.f32 %v340, %v362
    %v367 = vmul.f32 %v355, %v363
    %v368 = vadd.f32 %v364, 1.4214138
    %v369 = vadd.f32 %v365, 1.4214138
    %v370 = vadd.f32 %v366, 1.4214138
    %v371 = vadd.f32 %v367, 1.4214138
    %v372 = vmul.f32 %v310, %v368
    %v373 = vmul.f32 %v325, %v369
    %v374 = vmul.f32 %v340, %v370
    %v375 = vmul.f32 %v355, %v371
    %v376 = vadd.f32 %v372, -0.28449672
    %v377 = vadd.f32 %v373, -0.28449672
    %v378 = vadd.f32 %v374, -0.28449672
    %v379 = vadd.f32 %v375, -0.28449672
    %v380 = vmul.f32 %v310, %v376
    %v381 = vmul.f32 %v325, %v377
    %v382 = vmul.f32 %v340, %v378
    %v383 = vmul.f32 %v355, %v379
    %v384 = vadd.f32 %v380, 0.2548296
    %v385 = vadd.f32 %v381, 0.2548296
    %v386 = vadd.f32 %v382, 0.2548296
    %v387 = vadd.f32 %v383, 0.2548296
    %v388 = vmul.f32 %v310, %v384
    %v389 = vmul.f32 %v325, %v385
    %v390 = vmul.f32 %v340, %v386
    %v391 = vmul.f32 %v355, %v387
    %v392 = vsub.f32 0.0, %v284
    %v393 = vsub.f32 0.0, %v285
    %v394 = vsub.f32 0.0, %v286
    %v395 = vsub.f32 0.0, %v287
    %v396 = vmul.f32 %v392, %v284
    %v397 = vmul.f32 %v393, %v285
    %v398 = vmul.f32 %v394, %v286
    %v399 = vmul.f32 %v395, %v287
    %v400 = vmul.f32 %v396, 1.442695
    %v401 = vpow.pop %v400
    %v402 = vmul.f32 %v397, 1.442695
    %v403 = vpow.pop %v402
    %v404 = vmul.f32 %v398, 1.442695
    %v405 = vpow.pop %v404
    %v406 = vmul.f32 %v399, 1.442695
    %v407 = vpow.pop %v406
    %v408 = vmul.f32 %v388, %v401
    %v409 = vmul.f32 %v389, %v403
    %v410 = vmul.f32 %v390, %v405
    %v411 = vmul.f32 %v391, %v407
    %v412 = vsub.f32 1.0, %v408
    %v413 = vsub.f32 1.0, %v409
    %v414 = vsub.f32 1.0, %v410
    %v415 = vsub.f32 1.0, %v411
    %vm416 = vcmp.lt.f32.partialorder %v280, 0.0
    %vm417 = vcmp.lt.f32.partialorder %v281, 0.0
    %vm418 = vcmp.lt.f32.partialorder %v282, 0.0
    %vm419 = vcmp.lt.f32.partialorder %v283, 0.0
    %v420 = vsub.f32 0.0, %v412
    %v421 = vsub.f32 0.0, %v413
    %v422 = vsub.f32 0.0, %v414
    %v423 = vsub.f32 0.0, %v415
    %v424 = vsel %vm416, %v420, %v412
    %v425 = vsel %vm417, %v421, %v413
    %v426 = vsel %vm418, %v422, %v414
    %v427 = vsel %vm419, %v423, %v415
    %v428 = vadd.f32 %v424, 1.0
    %v429 = vadd.f32 %v425, 1.0
    %v430 = vadd.f32 %v426, 1.0
    %v431 = vadd.f32 %v427, 1.0
    %v432 = vmul.f32 %v428, 0.5
    %v433 = vmul.f32 %v429, 0.5
    %v434 = vmul.f32 %v430, 0.5
    %v435 = vmul.f32 %v431, 0.5
    %v436 = vmul.f32 %v432, 32.0
    %v437 = vmul.f32 %v433, 32.0
    %v438 = vmul.f32 %v434, 32.0
    %v439 = vmul.f32 %v435, 32.0
    %v440 = vfloor.f32 %v436
    %v441 = vfloor.f32 %v437
    %v442 = vfloor.f32 %v438
    %v443 = vfloor.f32 %v439
    %v444 = vmax.f32 %v440, 0.0
    %v445 = vmax.f32 %v441, 0.0
    %v446 = vmax.f32 %v442, 0.0
    %v447 = vmax.f32 %v443, 0.0
    %v448 = vmin.f32 %v444, 31.0
    %v449 = vmin.f32 %v445, 31.0
    %v450 = vmin.f32 %v446, 31.0
    %v451 = vmin.f32 %v447, 31.0
    %v452 = vcvt.f32.s32.to.zero.pseudo %v448
    %v453 = vcvt.f32.s32.to.zero.pseudo %v449
    %v454 = vcvt.f32.s32.to.zero.pseudo %v450
    %v455 = vcvt.f32.s32.to.zero.pseudo %v451
    %v456 = vpack.c.b16 %v453, %v452
    %v457 = vpack.c.b16 %v455, %v454
    %v458 = vpack.c.b8 %v457, %v456
    %459 = vst [vmem:[#allocation9] sm:$0xff] %v458
    // Predicated region
    $region26: #{tpu_custom_call.1} parent=1 // pred_check
      _
    $region27: #{tpu_custom_call.1} parent=1 // pred_check_branch
      %461 = sbr.rel (0) target = $region29
    $region28: #{tpu_custom_call.1} parent=1 // pred_region
      %463 = vsyncadd [#allocation4], 0
      %s465 = sshll.u32 [#allocation9], 4
      %s466 = int_to_ptr.vmem [resolvable:$true] %s465
      %s467 = sshll.u32 %s3, 4
      %s468 = int_to_ptr.hbm [resolvable:$true] %s467
      %470 = dma.vmem_to_hbm [thread:$0]  %s466, 128, %s468, [#allocation4]
    $region29: #{tpu_custom_call.1} parent=1 // pred_fallthru
      _
    // Predicated region
    $region30: #{tpu_custom_call.1} parent=1 // pred_check
      _
    $region31: #{tpu_custom_call.1} parent=1 // pred_check_branch
      %472 = sbr.rel (0) target = $region33
    $region32: #{tpu_custom_call.1} parent=1 // pred_region
      %474 = dma.done [#allocation4], 128
    $region33: #{tpu_custom_call.1} parent=1 // pred_fallthru
      _
    %475 = vsyncpa [#allocation3], 1
    %476 = vsyncpa [#allocation7], 1
    %477 = vsyncpa [#allocation4], 1
    %478 = vsyncpa [#allocation5], 1

// kernel: tpu_custom_call.1
$region0: #{tpu_custom_call.1}
  #allocation0 [shape = 'u32[]', space=smem, size = 0x4, offset = 0x4, fixed_abs, tag = 'smem constant byte address 0x4 - core index']
  #allocation1 [shape = 'u32[72,128]{1,0:T(1,128)}', space=vmem, size = 0x9000, scoped, tag = 'internal scratch']
  %s0 = inlined_call_operand.hbm [shape: f32[32,48], index: 0, kind: input, shape index: {}]
  %s1 = inlined_call_operand.hbm [shape: f32[48,128], index: 1, kind: input, shape index: {}]
  %s2 = inlined_call_operand.vmem [shape: f32[31], index: 2, kind: input, shape index: {}]
  %s3 = inlined_call_operand.hbm [shape: s8[32,128], index: 3, kind: output, shape index: {}]
  %s4 = sld [smem:[#allocation0]]
  $region34: #{tpu_custom_call.1} parent=0
    _
  %s6 = ssub.s32 1, %s4
  %s7 = scalar_select 0, %s6, %s4
  $region1: #{tpu_custom_call.1} parent=0
    #allocation2 [shape = 'u8[16384]{0}', space=vmem, size = 0x4000, scoped, tag = 'input window, operand 0, single buffered']
    #allocation3 [shape = 's32[1]{0}', space=sflag, size = 0x4, scoped, tag = 'scoped memory for tpu_custom_call.1']
    #allocation4 [shape = 's32[1]{0}', space=sflag, size = 0x4, scoped, tag = 'scoped memory for tpu_custom_call.1']
    #allocation5 [shape = 's32[1]{0}', space=sflag, size = 0x4, scoped, tag = 'scoped memory for tpu_custom_call.1']
    #allocation6 [shape = 'u8[24576]{0}', space=vmem, size = 0x6000, scoped, tag = 'input window, operand 1, single buffered']
    #allocation7 [shape = 's32[1]{0}', space=sflag, size = 0x4, scoped, tag = 'scoped memory for tpu_custom_call.1']
    #allocation8 [shape = 'u8[512]{0}', space=smem, size = 0x200, scoped, tag = 'input window, operand 2, single buffered']
    #allocation9 [shape = 'u8[4096]{0}', space=vmem, size = 0x1000, scoped, tag = 'output window, operand 0, single buffered']
    %8 = vsyncpa [#allocation3], 0
    %9 = vsyncpa [#allocation7], 0
    %10 = vsyncpa [#allocation5], 0
    %11 = vsyncpa [#allocation4], 0
    // Predicated region
    $region2: #{tpu_custom_call.1} parent=1 // pred_check
      _
    $region3: #{tpu_custom_call.1} parent=1 // pred_check_branch
      %13 = sbr.rel (0) target = $region5
    $region4: #{tpu_custom_call.1} parent=1 // pred_region
      %15 = vsyncadd [#allocation3], 0
      %s16 = sshll.u32 %s0, 4
      %s17 = int_to_ptr.hbm [resolvable:$true] %s16
      %s18 = sshll.u32 [#allocation2], 4
      %s19 = int_to_ptr.vmem [resolvable:$true] %s18
      %24 = dma.hbm_to_vmem [thread:$0]  %s17, 512, %s19, [#allocation3], 128, 128, 8
    $region5: #{tpu_custom_call.1} parent=1 // pred_fallthru
      _
    // Predicated region
    $region6: #{tpu_custom_call.1} parent=1 // pred_check
      _
    $region7: #{tpu_custom_call.1} parent=1 // pred_check_branch
      %26 = sbr.rel (0) target = $region9
    $region8: #{tpu_custom_call.1} parent=1 // pred_region
      %28 = vsyncadd [#allocation7], 0
      %s29 = sshll.u32 %s1, 4
      %s30 = int_to_ptr.hbm [resolvable:$true] %s29
      %s31 = sshll.u32 [#allocation6], 4
      %s32 = int_to_ptr.vmem [resolvable:$true] %s31
      %37 = dma.hbm_to_vmem [thread:$0]  %s30, 768, %s32, [#allocation7], 128, 128, 8
    $region9: #{tpu_custom_call.1} parent=1 // pred_fallthru
      _
    // Predicated region
    $region10: #{tpu_custom_call.1} parent=1 // pred_check
      _
    $region11: #{tpu_custom_call.1} parent=1 // pred_check_branch
      %39 = sbr.rel (0) target = $region13
    $region12: #{tpu_custom_call.1} parent=1 // pred_region
      %41 = vsyncadd [#allocation5], 0
      %s43 = sshll.u32 %s2, 4
      %s44 = int_to_ptr.vmem [resolvable:$true] %s43
      %46 = dma.vmem_to_smem %s44, 16, [#allocation8], [#allocation5]
    $region13: #{tpu_custom_call.1} parent=1 // pred_fallthru
      _
    // Predicated region
    $region14: #{tpu_custom_call.1} parent=1 // pred_check
      _
    $region15: #{tpu_custom_call.1} parent=1 // pred_check_branch
      %48 = sbr.rel (0) target = $region17
    $region16: #{tpu_custom_call.1} parent=1 // pred_region
      %50 = dma.done [#allocation3], 512
    $region17: #{tpu_custom_call.1} parent=1 // pred_fallthru
      _
    // Predicated region
    $region18: #{tpu_custom_call.1} parent=1 // pred_check
      _
    $region19: #{tpu_custom_call.1} parent=1 // pred_check_branch
      %52 = sbr.rel (0) target = $region21
    $region20: #{tpu_custom_call.1} parent=1 // pred_region
      %54 = dma.done [#allocation7], 768
    $region21: #{tpu_custom_call.1} parent=1 // pred_fallthru
      _
    // Predicated region
    $region22: #{tpu_custom_call.1} parent=1 // pred_check
      _
    $region23: #{tpu_custom_call.1} parent=1 // pred_check_branch
      %56 = sbr.rel (0) target = $region25
    $region24: #{tpu_custom_call.1} parent=1 // pred_region
      %58 = dma.done [#allocation5], 16
    $region25: #{tpu_custom_call.1} parent=1 // pred_fallthru
      _
    %59 = sfence
    %v60 = vld [vmem:[#allocation2] sm:$0xff]
    %v61 = vld [vmem:[#allocation2 + $0x8] sm:$0xff]
    %v62 = vld [vmem:[#allocation2 + $0x10] sm:$0xff]
    %v63 = vld [vmem:[#allocation2 + $0x18] sm:$0xff]
    %vm64 = vcmask 392192
    %v65 = vsel %vm64, %v60, 0.0
    %66 = vadd.xlane.f32.xlu0 %v65
    %v67 = vpop.xlane.xlu0 %66
    %v68 = vsel %vm64, %v61, 0.0
    %69 = vadd.xlane.f32.xlu0 %v68
    %v70 = vpop.xlane.xlu0 %69
    %v71 = vsel %vm64, %v62, 0.0
    %72 = vadd.xlane.f32.xlu0 %v71
    %v73 = vpop.xlane.xlu0 %72
    %v74 = vsel %vm64, %v63, 0.0
    %75 = vadd.xlane.f32.xlu0 %v74
    %v76 = vpop.xlane.xlu0 %75
    %v77 = vmul.f32 %v60, %v60
    %v78 = vmul.f32 %v61, %v61
    %v79 = vmul.f32 %v62, %v62
    %v80 = vmul.f32 %v63, %v63
    %v81 = vsel %vm64, %v77, 0.0
    %82 = vadd.xlane.f32.xlu0 %v81
    %v83 = vpop.xlane.xlu0 %82
    %v84 = vsel %vm64, %v78, 0.0
    %85 = vadd.xlane.f32.xlu0 %v84
    %v86 = vpop.xlane.xlu0 %85
    %v87 = vsel %vm64, %v79, 0.0
    %88 = vadd.xlane.f32.xlu0 %v87
    %v89 = vpop.xlane.xlu0 %88
    %v90 = vsel %vm64, %v80, 0.0
    %91 = vadd.xlane.f32.xlu0 %v90
    %v92 = vpop.xlane.xlu0 %91
    %v93 = vmul.f32 %v67, 0.020833334
    %v94 = vmul.f32 %v70, 0.020833334
    %v95 = vmul.f32 %v73, 0.020833334
    %v96 = vmul.f32 %v76, 0.020833334
    %v97 = vmul.f32 %v67, %v93
    %v98 = vmul.f32 %v70, %v94
    %v99 = vmul.f32 %v73, %v95
    %v100 = vmul.f32 %v76, %v96
    %v101 = vsub.f32 %v83, %v97
    %v102 = vsub.f32 %v86, %v98
    %v103 = vsub.f32 %v89, %v99
    %v104 = vsub.f32 %v92, %v100
    %v105 = vmul.f32 %v101, 0.021276595
    %v106 = vmul.f32 %v102, 0.021276595
    %v107 = vmul.f32 %v103, 0.021276595
    %v108 = vmul.f32 %v104, 0.021276595
    %v109 = vmax.f32 %v105, 0.0
    %v110 = vmax.f32 %v106, 0.0
    %v111 = vmax.f32 %v107, 0.0
    %v112 = vmax.f32 %v108, 0.0
    %v113 = vrsqrt.pop %v109
    %v114 = vmul.f32 %v113, %v109
    %v115 = vmul.f32 %v114, %v113
    %v116 = vmul.f32 0.5, %v115
    %v117 = vsub.f32 1.5, %v116
    %v118 = vmul.f32 %v113, %v117
    %v119 = vmul.f32 %v109, %v118
    %vm120 = vcmp.eq.f32.partialorder %v109, inf
    %v121 = vsel %vm120, %v109, %v119
    %vm122 = vcmp.eq.f32.partialorder %v109, 0.0
    %v123 = vand.u32 %v109, 2147483648
    %v124 = vsel %vm122, %v123, %v121
    %v125 = vrsqrt.pop %v110
    %v126 = vmul.f32 %v125, %v110
    %v127 = vmul.f32 %v126, %v125
    %v128 = vmul.f32 0.5, %v127
    %v129 = vsub.f32 1.5, %v128
    %v130 = vmul.f32 %v125, %v129
    %v131 = vmul.f32 %v110, %v130
    %vm132 = vcmp.eq.f32.partialorder %v110, inf
    %v133 = vsel %vm132, %v110, %v131
    %vm134 = vcmp.eq.f32.partialorder %v110, 0.0
    %v135 = vand.u32 %v110, 2147483648
    %v136 = vsel %vm134, %v135, %v133
    %v137 = vrsqrt.pop %v111
    %v138 = vmul.f32 %v137, %v111
    %v139 = vmul.f32 %v138, %v137
    %v140 = vmul.f32 0.5, %v139
    %v141 = vsub.f32 1.5, %v140
    %v142 = vmul.f32 %v137, %v141
    %v143 = vmul.f32 %v111, %v142
    %vm144 = vcmp.eq.f32.partialorder %v111, inf
    %v145 = vsel %vm144, %v111, %v143
    %vm146 = vcmp.eq.f32.partialorder %v111, 0.0
    %v147 = vand.u32 %v111, 2147483648
    %v148 = vsel %vm146, %v147, %v145
    %v149 = vrsqrt.pop %v112
    %v150 = vmul.f32 %v149, %v112
    %v151 = vmul.f32 %v150, %v149
    %v152 = vmul.f32 0.5, %v151
    %v153 = vsub.f32 1.5, %v152
    %v154 = vmul.f32 %v149, %v153
    %v155 = vmul.f32 %v112, %v154
    %vm156 = vcmp.eq.f32.partialorder %v112, inf
    %v157 = vsel %vm156, %v112, %v155
    %vm158 = vcmp.eq.f32.partialorder %v112, 0.0
    %v159 = vand.u32 %v112, 2147483648
    %v160 = vsel %vm158, %v159, %v157
    %v161 = vadd.f32 %v124, 1e-08
    %v162 = vadd.f32 %v136, 1e-08
    %v163 = vadd.f32 %v148, 1e-08
    %v164 = vadd.f32 %v160, 1e-08
    %v165 = vrcp.pop %v161
    %v166 = vmul.f32 %v161, %v165
    %v167 = vsub.f32 1.0, %v166
    %v168 = vmul.f32 %v165, %v167
    %v169 = vadd.f32 %v165, %v168
    %vm170 = vweird.f32 %v161
    %vm171 = vweird.f32 %v165
    %vm172 = vmor %vm170, %vm171
    %v173 = vsel %vm172, %v165, %v169
    %v174 = vand.u32 2147483647, %v161
    %vm175 = vcmp.eq.f32.partialorder %v174, 8.507059e+37
    %v176 = vand.u32 %v161, 2147483648
    %v177 = vor.u32 1.1754944e-38, %v176
    %v178 = vsel %vm175, %v177, %v173
    %v179 = vmul.f32 1.0, %v178
    %v180 = vrcp.pop %v162
    %v181 = vmul.f32 %v162, %v180
    %v182 = vsub.f32 1.0, %v181
    %v183 = vmul.f32 %v180, %v182
    %v184 = vadd.f32 %v180, %v183
    %vm185 = vweird.f32 %v162
    %vm186 = vweird.f32 %v180
    %vm187 = vmor %vm185, %vm186
    %v188 = vsel %vm187, %v180, %v184
    %v189 = vand.u32 2147483647, %v162
    %vm190 = vcmp.eq.f32.partialorder %v189, 8.507059e+37
    %v191 = vand.u32 %v162, 2147483648
    %v192 = vor.u32 1.1754944e-38, %v191
    %v193 = vsel %vm190, %v192, %v188
    %v194 = vmul.f32 1.0, %v193
    %v195 = vrcp.pop %v163
    %v196 = vmul.f32 %v163, %v195
    %v197 = vsub.f32 1.0, %v196
    %v198 = vmul.f32 %v195, %v197
    %v199 = vadd.f32 %v195, %v198
    %vm200 = vweird.f32 %v163
    %vm201 = vweird.f32 %v195
    %vm202 = vmor %vm200, %vm201
    %v203 = vsel %vm202, %v195, %v199
    %v204 = vand.u32 2147483647, %v163
    %vm205 = vcmp.eq.f32.partialorder %v204, 8.507059e+37
    %v206 = vand.u32 %v163, 2147483648
    %v207 = vor.u32 1.1754944e-38, %v206
    %v208 = vsel %vm205, %v207, %v203
    %v209 = vmul.f32 1.0, %v208
    %v210 = vrcp.pop %v164
    %v211 = vmul.f32 %v164, %v210
    %v212 = vsub.f32 1.0, %v211
    %v213 = vmul.f32 %v210, %v212
    %v214 = vadd.f32 %v210, %v213
    %vm215 = vweird.f32 %v164
    %vm216 = vweird.f32 %v210
    %vm217 = vmor %vm215, %vm216
    %v218 = vsel %vm217, %v210, %v214
    %v219 = vand.u32 2147483647, %v164
    %vm220 = vcmp.eq.f32.partialorder %v219, 8.507059e+37
    %v221 = vand.u32 %v164, 2147483648
    %v222 = vor.u32 1.1754944e-38, %v221
    %v223 = vsel %vm220, %v222, %v218
    %v224 = vmul.f32 1.0, %v223
    %v225 = vld [vmem:[#allocation6] sm:$0xff]
    %v226 = vld [vmem:[#allocation6 + $0x8] sm:$0xff]
    %v227 = vld [vmem:[#allocation6 + $0x10] sm:$0xff]
    %v228 = vld [vmem:[#allocation6 + $0x18] sm:$0xff]
    %v229 = vld [vmem:[#allocation6 + $0x20] sm:$0xff]
    %v230 = vld [vmem:[#allocation6 + $0x28] sm:$0xff]
    %v232 = vsel %vm64, %v60, 0
    %v235 = vsel %vm64, %v61, 0
    %v238 = vsel %vm64, %v62, 0
    %v241 = vsel %vm64, %v63, 0
    %243 = vmatpush.msra.mxu0 0.0
    %244 = vmatpush.msra.mxu0 0.0
    %245 = vmatpush.msra.mxu0 0.0
    %246 = vmatpush.msra.mxu0 0.0
    %247 = vmatpush.msra.mxu0 0.0
    %248 = vmatpush.msra.mxu0 0.0
    %249 = vmatpush.msra.mxu0 0.0
    %250 = vmatpush.msra.mxu0 0.0
    %251 = vmatpush.msra.mxu0 0.0
    %252 = vmatpush.msra.mxu0 0.0
    %253 = vmatpush.msra.mxu0 %v230
    %254 = vmatpush.msra.mxu0 %v229
    %255 = vmatpush.msra.mxu0 %v228
    %256 = vmatpush.msra.mxu0 %v227
    %257 = vmatpush.msra.mxu0 %v226
    %258 = vmatpush.msra.mxu0 %v225
    %259 = vmatmul.f32.gmra.mxu0 %v232
    %v260 = vpop.f32.mrf.mxu0
    %v261 = vadd.f32 0.0, %v260
    %262 = vmatmul.f32.gmra.mxu0 %v235
    %v263 = vpop.f32.mrf.mxu0
    %v264 = vadd.f32 0.0, %v263
    %265 = vmatmul.f32.gmra.mxu0 %v238
    %v266 = vpop.f32.mrf.mxu0
    %v267 = vadd.f32 0.0, %v266
    %268 = vmatmul.f32.gmra.mxu0 %v241
    %v269 = vpop.f32.mrf.mxu0
    %v270 = vadd.f32 0.0, %v269
    %271 = vdwg.mxu0
    %v272 = vsub.f32 %v261, %v93
    %v273 = vsub.f32 %v264, %v94
    %v274 = vsub.f32 %v267, %v95
    %v275 = vsub.f32 %v270, %v96
    %v276 = vmul.f32 %v272, %v179
    %v277 = vmul.f32 %v273, %v194
    %v278 = vmul.f32 %v274, %v209
    %v279 = vmul.f32 %v275, %v224
    %v280 = vmul.f32 %v276, 0.70710677
    %v281 = vmul.f32 %v277, 0.70710677
    %v282 = vmul.f32 %v278, 0.70710677
    %v283 = vmul.f32 %v279, 0.70710677
    %v284 = vand.u32 2147483647, %v280
    %v285 = vand.u32 2147483647, %v281
    %v286 = vand.u32 2147483647, %v282
    %v287 = vand.u32 2147483647, %v283
    %v288 = vmul.f32 %v284, 0.3275911
    %v289 = vmul.f32 %v285, 0.3275911
    %v290 = vmul.f32 %v286, 0.3275911
    %v291 = vmul.f32 %v287, 0.3275911
    %v292 = vadd.f32 %v288, 1.0
    %v293 = vadd.f32 %v289, 1.0
    %v294 = vadd.f32 %v290, 1.0
    %v295 = vadd.f32 %v291, 1.0
    %v296 = vrcp.pop %v292
    %v297 = vmul.f32 %v292, %v296
    %v298 = vsub.f32 1.0, %v297
    %v299 = vmul.f32 %v296, %v298
    %v300 = vadd.f32 %v296, %v299
    %vm301 = vweird.f32 %v292
    %vm302 = vweird.f32 %v296
    %vm303 = vmor %vm301, %vm302
    %v304 = vsel %vm303, %v296, %v300
    %v305 = vand.u32 2147483647, %v292
    %vm306 = vcmp.eq.f32.partialorder %v305, 8.507059e+37
    %v307 = vand.u32 %v292, 2147483648
    %v308 = vor.u32 1.1754944e-38, %v307
    %v309 = vsel %vm306, %v308, %v304
    %v310 = vmul.f32 1.0, %v309
    %v311 = vrcp.pop %v293
    %v312 = vmul.f32 %v293, %v311
    %v313 = vsub.f32 1.0, %v312
    %v314 = vmul.f32 %v311, %v313
    %v315 = vadd.f32 %v311, %v314
    %vm316 = vweird.f32 %v293
    %vm317 = vweird.f32 %v311
    %vm318 = vmor %vm316, %vm317
    %v319 = vsel %vm318, %v311, %v315
    %v320 = vand.u32 2147483647, %v293
    %vm321 = vcmp.eq.f32.partialorder %v320, 8.507059e+37
    %v322 = vand.u32 %v293, 2147483648
    %v323 = vor.u32 1.1754944e-38, %v322
    %v324 = vsel %vm321, %v323, %v319
    %v325 = vmul.f32 1.0, %v324
    %v326 = vrcp.pop %v294
    %v327 = vmul.f32 %v294, %v326
    %v328 = vsub.f32 1.0, %v327
    %v329 = vmul.f32 %v326, %v328
    %v330 = vadd.f32 %v326, %v329
    %vm331 = vweird.f32 %v294
    %vm332 = vweird.f32 %v326
    %vm333 = vmor %vm331, %vm332
    %v334 = vsel %vm333, %v326, %v330
    %v335 = vand.u32 2147483647, %v294
    %vm336 = vcmp.eq.f32.partialorder %v335, 8.507059e+37
    %v337 = vand.u32 %v294, 2147483648
    %v338 = vor.u32 1.1754944e-38, %v337
    %v339 = vsel %vm336, %v338, %v334
    %v340 = vmul.f32 1.0, %v339
    %v341 = vrcp.pop %v295
    %v342 = vmul.f32 %v295, %v341
    %v343 = vsub.f32 1.0, %v342
    %v344 = vmul.f32 %v341, %v343
    %v345 = vadd.f32 %v341, %v344
    %vm346 = vweird.f32 %v295
    %vm347 = vweird.f32 %v341
    %vm348 = vmor %vm346, %vm347
    %v349 = vsel %vm348, %v341, %v345
    %v350 = vand.u32 2147483647, %v295
    %vm351 = vcmp.eq.f32.partialorder %v350, 8.507059e+37
    %v352 = vand.u32 %v295, 2147483648
    %v353 = vor.u32 1.1754944e-38, %v352
    %v354 = vsel %vm351, %v353, %v349
    %v355 = vmul.f32 1.0, %v354
    %v356 = vmul.f32 %v310, 1.0614054
    %v357 = vmul.f32 %v325, 1.0614054
    %v358 = vmul.f32 %v340, 1.0614054
    %v359 = vmul.f32 %v355, 1.0614054
    %v360 = vadd.f32 %v356, -1.4531521
    %v361 = vadd.f32 %v357, -1.4531521
    %v362 = vadd.f32 %v358, -1.4531521
    %v363 = vadd.f32 %v359, -1.4531521
    %v364 = vmul.f32 %v310, %v360
    %v365 = vmul.f32 %v325, %v361
    %v366 = vmul.f32 %v340, %v362
    %v367 = vmul.f32 %v355, %v363
    %v368 = vadd.f32 %v364, 1.4214138
    %v369 = vadd.f32 %v365, 1.4214138
    %v370 = vadd.f32 %v366, 1.4214138
    %v371 = vadd.f32 %v367, 1.4214138
    %v372 = vmul.f32 %v310, %v368
    %v373 = vmul.f32 %v325, %v369
    %v374 = vmul.f32 %v340, %v370
    %v375 = vmul.f32 %v355, %v371
    %v376 = vadd.f32 %v372, -0.28449672
    %v377 = vadd.f32 %v373, -0.28449672
    %v378 = vadd.f32 %v374, -0.28449672
    %v379 = vadd.f32 %v375, -0.28449672
    %v380 = vmul.f32 %v310, %v376
    %v381 = vmul.f32 %v325, %v377
    %v382 = vmul.f32 %v340, %v378
    %v383 = vmul.f32 %v355, %v379
    %v384 = vadd.f32 %v380, 0.2548296
    %v385 = vadd.f32 %v381, 0.2548296
    %v386 = vadd.f32 %v382, 0.2548296
    %v387 = vadd.f32 %v383, 0.2548296
    %v388 = vmul.f32 %v310, %v384
    %v389 = vmul.f32 %v325, %v385
    %v390 = vmul.f32 %v340, %v386
    %v391 = vmul.f32 %v355, %v387
    %v392 = vsub.f32 0.0, %v284
    %v393 = vsub.f32 0.0, %v285
    %v394 = vsub.f32 0.0, %v286
    %v395 = vsub.f32 0.0, %v287
    %v396 = vmul.f32 %v392, %v284
    %v397 = vmul.f32 %v393, %v285
    %v398 = vmul.f32 %v394, %v286
    %v399 = vmul.f32 %v395, %v287
    %v400 = vmul.f32 %v396, 1.442695
    %v401 = vpow.pop %v400
    %v402 = vmul.f32 %v397, 1.442695
    %v403 = vpow.pop %v402
    %v404 = vmul.f32 %v398, 1.442695
    %v405 = vpow.pop %v404
    %v406 = vmul.f32 %v399, 1.442695
    %v407 = vpow.pop %v406
    %v408 = vmul.f32 %v388, %v401
    %v409 = vmul.f32 %v389, %v403
    %v410 = vmul.f32 %v390, %v405
    %v411 = vmul.f32 %v391, %v407
    %v412 = vsub.f32 1.0, %v408
    %v413 = vsub.f32 1.0, %v409
    %v414 = vsub.f32 1.0, %v410
    %v415 = vsub.f32 1.0, %v411
    %vm416 = vcmp.lt.f32.partialorder %v280, 0.0
    %vm417 = vcmp.lt.f32.partialorder %v281, 0.0
    %vm418 = vcmp.lt.f32.partialorder %v282, 0.0
    %vm419 = vcmp.lt.f32.partialorder %v283, 0.0
    %v420 = vsub.f32 0.0, %v412
    %v421 = vsub.f32 0.0, %v413
    %v422 = vsub.f32 0.0, %v414
    %v423 = vsub.f32 0.0, %v415
    %v424 = vsel %vm416, %v420, %v412
    %v425 = vsel %vm417, %v421, %v413
    %v426 = vsel %vm418, %v422, %v414
    %v427 = vsel %vm419, %v423, %v415
    %v428 = vadd.f32 %v424, 1.0
    %v429 = vadd.f32 %v425, 1.0
    %v430 = vadd.f32 %v426, 1.0
    %v431 = vadd.f32 %v427, 1.0
    %v432 = vmul.f32 %v428, 0.5
    %v433 = vmul.f32 %v429, 0.5
    %v434 = vmul.f32 %v430, 0.5
    %v435 = vmul.f32 %v431, 0.5
    %v436 = vmul.f32 %v432, 32.0
    %v437 = vmul.f32 %v433, 32.0
    %v438 = vmul.f32 %v434, 32.0
    %v439 = vmul.f32 %v435, 32.0
    %v440 = vfloor.f32 %v436
    %v441 = vfloor.f32 %v437
    %v442 = vfloor.f32 %v438
    %v443 = vfloor.f32 %v439
    %v444 = vmax.f32 %v440, 0.0
    %v445 = vmax.f32 %v441, 0.0
    %v446 = vmax.f32 %v442, 0.0
    %v447 = vmax.f32 %v443, 0.0
    %v448 = vmin.f32 %v444, 31.0
    %v449 = vmin.f32 %v445, 31.0
    %v450 = vmin.f32 %v446, 31.0
    %v451 = vmin.f32 %v447, 31.0
    %v452 = vcvt.f32.s32.to.zero.pseudo %v448
    %v453 = vcvt.f32.s32.to.zero.pseudo %v449
    %v454 = vcvt.f32.s32.to.zero.pseudo %v450
    %v455 = vcvt.f32.s32.to.zero.pseudo %v451
    %v456 = vpack.c.b16 %v453, %v452
    %v457 = vpack.c.b16 %v455, %v454
    %v458 = vpack.c.b8 %v457, %v456
    %459 = vst [vmem:[#allocation9] sm:$0xff] %v458
    // Predicated region
    $region26: #{tpu_custom_call.1} parent=1 // pred_check
      _
    $region27: #{tpu_custom_call.1} parent=1 // pred_check_branch
      %461 = sbr.rel (0) target = $region29
    $region28: #{tpu_custom_call.1} parent=1 // pred_region
      %463 = vsyncadd [#allocation4], 0
      %s465 = sshll.u32 [#allocation9], 4
      %s466 = int_to_ptr.vmem [resolvable:$true] %s465
      %s467 = sshll.u32 %s3, 4
      %s468 = int_to_ptr.hbm [resolvable:$true] %s467
      %470 = dma.vmem_to_hbm [thread:$0]  %s466, 128, %s468, [#allocation4]
    $region29: #{tpu_custom_call.1} parent=1 // pred_fallthru
      _
    // Predicated region
    $region30: #{tpu_custom_call.1} parent=1 // pred_check
      _
    $region31: #{tpu_custom_call.1} parent=1 // pred_check_branch
      %472 = sbr.rel (0) target = $region33
    $region32: #{tpu_custom_call.1} parent=1 // pred_region
      %474 = dma.done [#allocation4], 128
    $region33: #{tpu_custom_call.1} parent=1 // pred_fallthru
      _
    %475 = vsyncpa [#allocation3], 1
    %476 = vsyncpa [#allocation7], 1
    %477 = vsyncpa [#allocation4], 1
    %478 = vsyncpa [#allocation5], 1

</llo_original>
